<compile_context>
chip_gen: v7x
topology: tpu7x:2x2x1
jax: 0.10.0
libtpu: 0.0.40
codegen_flags: <defaults>
</compile_context>

<pallas_src>
import functools

import jax
import jax.numpy as jnp
import numpy as np
from jax import lax
from jax.experimental import pallas as pl
from jax.experimental.pallas import tpu as pltpu


def _round_up(a, b):
    return ((a + b - 1) // b) * b


def _pick_tile(total_ceil, unit, cap):
    """Tile size (multiple of `unit`, <= cap) for an axis of (unit-padded) length
    `total_ceil`, minimizing wasted (padded) compute, preferring fewer grid steps."""
    if total_ceil <= cap:
        return total_ceil
    n = total_ceil // unit
    # exact-divisor candidate: zero padded compute
    div = unit
    for d in range(1, n + 1):
        t = d * unit
        if t > cap:
            break
        if n % d == 0:
            div = t
    # balanced candidate: fewest blocks, waste < `unit` per block
    nblk = -(-total_ceil // cap)
    bal = _round_up(-(-total_ceil // nblk), unit)
    if bal > cap:
        bal = div
    cost_div = -(-total_ceil // div) * div
    cost_bal = -(-total_ceil // bal) * bal
    if cost_bal < cost_div:
        return bal
    if cost_div < cost_bal:
        return div
    return max(div, bal)


def _rbf_act_kernel(x_ref, w_ref, o_ref, *, mus, neg_inv_two_sigma2, chunk_rows):
    # x_ref: (tr, tm) activation tile, one row per (n, c) pair.
    # w_ref: (tr, 128) per-row RBF weights (lane-padded), row r -> weight[c // group].
    # o_ref: (tr, tm)
    tr = x_ref.shape[0]
    n_chunks = tr // chunk_rows

    def process(r):
        # One (chunk_rows, tm) chunk: x and the f32 accumulator stay in vregs across all
        # num_weights terms, so VMEM traffic is 1 load + 1 store per element.
        x = x_ref[pl.ds(r, chunk_rows), :].astype(jnp.float32)
        w = w_ref[pl.ds(r, chunk_rows), :].astype(jnp.float32)   # 1-2 vregs per chunk
        acc = jnp.zeros_like(x)                                  # f32 accumulator
        # num_weights is a small compile-time constant -> fully unrolled VPU/EUP loop.
        for j, mu in enumerate(mus):
            d = x - mu
            acc = acc + w[:, j:j + 1] * jnp.exp((d * d) * neg_inv_two_sigma2)
        o_ref[pl.ds(r, chunk_rows), :] = acc.astype(o_ref.dtype)

    if n_chunks <= 4:
        for i in range(n_chunks):          # static slices
            process(i * chunk_rows)
    else:
        def body(i, carry):
            process(pl.multiple_of(i * chunk_rows, chunk_rows))
            return carry
        lax.fori_loop(0, n_chunks, body, 0)


def trainable_activation_forward(x, weight, *, vmin, vmax, group=1,
                                 max_tile_r=256, max_tile_m=1024):
    """Forward pass of TrainableActivation (base_type='rbf') as a Pallas TPU kernel.

    Operates directly on NCHW viewed as (N*C, H*W); the weight row used for row
    r = n*C + c is weight[c // group], matching PyTorch's
    x.transpose(0,1).contiguous().view(C//group, -1) row assignment.
    """
    N, C, H, W = x.shape
    if C % group != 0:
        raise RuntimeError("Input shape must be a multiple of group!")
    G, Nw = weight.shape
    assert G == C // group, "weight rows must equal C // group"

    R, M = N * C, H * W
    x_r = x.reshape(R, M)        # free row-major view; no transposes, no padding

    # Per-(n, c) weight rows, lane-padded to a multiple of 128 for unmasked loads.
    # Tiny (R x 128) array; its DMA per row-block is negligible vs. the x tile.
    nw_pad = _round_up(Nw, 128)
    w_pad = jnp.pad(weight.astype(jnp.float32), ((0, 0), (0, nw_pad - Nw)))
    w_rows = jnp.tile(jnp.repeat(w_pad, group, axis=0), (N, 1))   # (R, nw_pad)

    # Tile selection: multiples of the (8,128) sublane/lane tiling (16 sublanes for
    # 16-bit I/O), minimal padded compute, column tile <= 1024 so an (8, tm) f32 chunk
    # plus accumulator and temporaries fits the 64-entry vreg file.
    sub = 16 if jnp.dtype(x.dtype).itemsize == 2 else 8
    R_ceil = _round_up(R, sub)
    M_ceil = _round_up(M, 128)
    tr = _pick_tile(R_ceil, sub, max_tile_r)
    tm = _pick_tile(M_ceil, 128, max_tile_m)

    # Guarantee >= 2 grid blocks whenever possible so both v7x TensorCores get work.
    if pl.cdiv(R, tr) * pl.cdiv(M, tm) < 2:
        if M_ceil >= 256:
            tm = _round_up(M_ceil // 2, 128)
        elif R_ceil >= 2 * sub:
            tr = _round_up(R_ceil // 2, sub)

    grid = (pl.cdiv(R, tr), pl.cdiv(M, tm))

    sigma = (vmax - vmin) / (Nw - 1)
    mus = tuple(float(m) for m in np.linspace(vmin, vmax, Nw))
    neg_inv_two_sigma2 = float(-1.0 / (2.0 * sigma * sigma))

    kernel = functools.partial(_rbf_act_kernel, mus=mus,
                               neg_inv_two_sigma2=neg_inv_two_sigma2,
                               chunk_rows=sub)

    itemsize = jnp.dtype(x.dtype).itemsize
    cost = pl.CostEstimate(
        flops=5 * Nw * R * M,
        transcendentals=Nw * R * M,
        bytes_accessed=2 * itemsize * R * M + 4 * R * nw_pad,
    )

    out = pl.pallas_call(
        kernel,
        out_shape=jax.ShapeDtypeStruct((R, M), x.dtype),
        grid_spec=pltpu.PrefetchScalarGridSpec(
            num_scalar_prefetch=0,
            grid=grid,
            in_specs=[
                pl.BlockSpec((tr, tm), lambda i, j: (i, j)),      # activation tile
                pl.BlockSpec((tr, nw_pad), lambda i, j: (i, 0)),  # per-row weights (const along j)
            ],
            out_specs=pl.BlockSpec((tr, tm), lambda i, j: (i, j)),
        ),
        compiler_params=pltpu.CompilerParams(
            dimension_semantics=("parallel", "parallel"),
            vmem_limit_bytes=32 * 1024 * 1024,
        ),
        cost_estimate=cost,
    )(x_r, w_rows)

    return out.reshape(N, C, H, W)


def init_weight_linear(num_groups, num_weights, vmin, vmax, init_scale=1.0):
    # reset_parameters() with init='linear'
    mus = np.linspace(vmin, vmax, num_weights, dtype=np.float32)[None, :]
    return jnp.asarray(np.tile(mus * init_scale, (num_groups, 1)))


def _reference_forward(x, weight, vmin, vmax, group=1):
    # pure-JAX reference of the same rbf semantics, for correctness check
    N, C, H, W = x.shape
    _, Nw = weight.shape
    sigma = (vmax - vmin) / (Nw - 1)
    mus = jnp.asarray(np.linspace(vmin, vmax, Nw, dtype=np.float32))
    w_c = jnp.repeat(weight, group, axis=0)                  # (C, Nw)
    d = x[..., None] - mus                                   # (N, C, H, W, Nw)
    phi = jnp.exp(-(d * d) / (2.0 * sigma * sigma))
    return jnp.einsum("nchwk,ck->nchw", phi, w_c)


if __name__ == "__main__":
    # module config: TrainableActivation(num_channels=4, vmin=-1, vmax=1,
    #                                    num_weights=31, base_type='rbf',
    #                                    init='linear', group=1)
    num_channels, num_weights = 4, 31
    vmin, vmax = -1.0, 1.0
    group = 1

    key = jax.random.PRNGKey(0)
    x = jax.random.uniform(key, (2, num_channels, 16, 16),
                           dtype=jnp.float32, minval=-2.0, maxval=2.0)
    weight = init_weight_linear(num_channels // group, num_weights, vmin, vmax)

    out = trainable_activation_forward(x, weight, vmin=vmin, vmax=vmax, group=group)
    out = jax.block_until_ready(out)

    ref = jax.block_until_ready(_reference_forward(x, weight, vmin, vmax, group=group))
    np.testing.assert_allclose(np.asarray(out), np.asarray(ref), rtol=1e-5, atol=1e-5)

    print("KERNEL_OK")
</pallas_src>

<mosaic_0001>
module attributes {stable_mosaic.version = 11 : i64} {
  func.func @_rbf_act_kernel(%arg0: i32, %arg1: i32, %arg2: memref<8x128xf32, #tpu.memory_space<vmem>>, %arg3: memref<8x128xf32, #tpu.memory_space<vmem>>, %arg4: memref<8x128xf32, #tpu.memory_space<vmem>>) attributes {dimension_semantics = [#tpu.dimension_semantics<parallel>, #tpu.dimension_semantics<parallel>], iteration_bounds = array<i64: 1, 2>, scalar_prefetch = 0 : i64, scratch_operands = 0 : i64, tpu.core_type = #tpu.core_type<tc>, window_params = [{transform_indices = @transform_0, window_bounds = array<i64: 8, 128>}, {transform_indices = @transform_1, window_bounds = array<i64: 8, 128>}, {transform_indices = @transform_2, window_bounds = array<i64: 8, 128>}]} {
    %c0 = arith.constant 0 : index
    %c0_0 = arith.constant 0 : index
    %0 = vector.load %arg2[%c0, %c0_0] : memref<8x128xf32, #tpu.memory_space<vmem>>, vector<8x128xf32>
    %c0_1 = arith.constant 0 : index
    %c0_2 = arith.constant 0 : index
    %1 = vector.load %arg3[%c0_1, %c0_2] : memref<8x128xf32, #tpu.memory_space<vmem>>, vector<8x128xf32>
    %cst = arith.constant 0.000000e+00 : f32
    %2 = vector.broadcast %cst : f32 to vector<8x128xf32>
    %cst_3 = arith.constant -1.000000e+00 : f32
    %3 = vector.broadcast %cst_3 : f32 to vector<8x128xf32>
    %4 = arith.subf %0, %3 : vector<8x128xf32>
    %5 = vector.extract_strided_slice %1 {offsets = [0, 0], sizes = [8, 1], strides = [1, 1]} : vector<8x128xf32> to vector<8x1xf32>
    %6 = arith.mulf %4, %4 : vector<8x128xf32>
    %cst_4 = arith.constant -1.125000e+02 : f32
    %7 = vector.broadcast %cst_4 : f32 to vector<8x128xf32>
    %8 = arith.mulf %6, %7 : vector<8x128xf32>
    %9 = math.exp %8 : vector<8x128xf32>
    %10 = vector.broadcast %5 : vector<8x1xf32> to vector<8x128xf32>
    %11 = arith.mulf %10, %9 : vector<8x128xf32>
    %12 = arith.addf %2, %11 : vector<8x128xf32>
    %cst_5 = arith.constant -0.933333337 : f32
    %13 = vector.broadcast %cst_5 : f32 to vector<8x128xf32>
    %14 = arith.subf %0, %13 : vector<8x128xf32>
    %15 = vector.extract_strided_slice %1 {offsets = [0, 1], sizes = [8, 1], strides = [1, 1]} : vector<8x128xf32> to vector<8x1xf32>
    %16 = arith.mulf %14, %14 : vector<8x128xf32>
    %cst_6 = arith.constant -1.125000e+02 : f32
    %17 = vector.broadcast %cst_6 : f32 to vector<8x128xf32>
    %18 = arith.mulf %16, %17 : vector<8x128xf32>
    %19 = math.exp %18 : vector<8x128xf32>
    %20 = vector.broadcast %15 : vector<8x1xf32> to vector<8x128xf32>
    %21 = arith.mulf %20, %19 : vector<8x128xf32>
    %22 = arith.addf %12, %21 : vector<8x128xf32>
    %cst_7 = arith.constant -0.866666674 : f32
    %23 = vector.broadcast %cst_7 : f32 to vector<8x128xf32>
    %24 = arith.subf %0, %23 : vector<8x128xf32>
    %25 = vector.extract_strided_slice %1 {offsets = [0, 2], sizes = [8, 1], strides = [1, 1]} : vector<8x128xf32> to vector<8x1xf32>
    %26 = arith.mulf %24, %24 : vector<8x128xf32>
    %cst_8 = arith.constant -1.125000e+02 : f32
    %27 = vector.broadcast %cst_8 : f32 to vector<8x128xf32>
    %28 = arith.mulf %26, %27 : vector<8x128xf32>
    %29 = math.exp %28 : vector<8x128xf32>
    %30 = vector.broadcast %25 : vector<8x1xf32> to vector<8x128xf32>
    %31 = arith.mulf %30, %29 : vector<8x128xf32>
    %32 = arith.addf %22, %31 : vector<8x128xf32>
    %cst_9 = arith.constant -8.000000e-01 : f32
    %33 = vector.broadcast %cst_9 : f32 to vector<8x128xf32>
    %34 = arith.subf %0, %33 : vector<8x128xf32>
    %35 = vector.extract_strided_slice %1 {offsets = [0, 3], sizes = [8, 1], strides = [1, 1]} : vector<8x128xf32> to vector<8x1xf32>
    %36 = arith.mulf %34, %34 : vector<8x128xf32>
    %cst_10 = arith.constant -1.125000e+02 : f32
    %37 = vector.broadcast %cst_10 : f32 to vector<8x128xf32>
    %38 = arith.mulf %36, %37 : vector<8x128xf32>
    %39 = math.exp %38 : vector<8x128xf32>
    %40 = vector.broadcast %35 : vector<8x1xf32> to vector<8x128xf32>
    %41 = arith.mulf %40, %39 : vector<8x128xf32>
    %42 = arith.addf %32, %41 : vector<8x128xf32>
    %cst_11 = arith.constant -0.733333349 : f32
    %43 = vector.broadcast %cst_11 : f32 to vector<8x128xf32>
    %44 = arith.subf %0, %43 : vector<8x128xf32>
    %45 = vector.extract_strided_slice %1 {offsets = [0, 4], sizes = [8, 1], strides = [1, 1]} : vector<8x128xf32> to vector<8x1xf32>
    %46 = arith.mulf %44, %44 : vector<8x128xf32>
    %cst_12 = arith.constant -1.125000e+02 : f32
    %47 = vector.broadcast %cst_12 : f32 to vector<8x128xf32>
    %48 = arith.mulf %46, %47 : vector<8x128xf32>
    %49 = math.exp %48 : vector<8x128xf32>
    %50 = vector.broadcast %45 : vector<8x1xf32> to vector<8x128xf32>
    %51 = arith.mulf %50, %49 : vector<8x128xf32>
    %52 = arith.addf %42, %51 : vector<8x128xf32>
    %cst_13 = arith.constant -0.666666686 : f32
    %53 = vector.broadcast %cst_13 : f32 to vector<8x128xf32>
    %54 = arith.subf %0, %53 : vector<8x128xf32>
    %55 = vector.extract_strided_slice %1 {offsets = [0, 5], sizes = [8, 1], strides = [1, 1]} : vector<8x128xf32> to vector<8x1xf32>
    %56 = arith.mulf %54, %54 : vector<8x128xf32>
    %cst_14 = arith.constant -1.125000e+02 : f32
    %57 = vector.broadcast %cst_14 : f32 to vector<8x128xf32>
    %58 = arith.mulf %56, %57 : vector<8x128xf32>
    %59 = math.exp %58 : vector<8x128xf32>
    %60 = vector.broadcast %55 : vector<8x1xf32> to vector<8x128xf32>
    %61 = arith.mulf %60, %59 : vector<8x128xf32>
    %62 = arith.addf %52, %61 : vector<8x128xf32>
    %cst_15 = arith.constant -6.000000e-01 : f32
    %63 = vector.broadcast %cst_15 : f32 to vector<8x128xf32>
    %64 = arith.subf %0, %63 : vector<8x128xf32>
    %65 = vector.extract_strided_slice %1 {offsets = [0, 6], sizes = [8, 1], strides = [1, 1]} : vector<8x128xf32> to vector<8x1xf32>
    %66 = arith.mulf %64, %64 : vector<8x128xf32>
    %cst_16 = arith.constant -1.125000e+02 : f32
    %67 = vector.broadcast %cst_16 : f32 to vector<8x128xf32>
    %68 = arith.mulf %66, %67 : vector<8x128xf32>
    %69 = math.exp %68 : vector<8x128xf32>
    %70 = vector.broadcast %65 : vector<8x1xf32> to vector<8x128xf32>
    %71 = arith.mulf %70, %69 : vector<8x128xf32>
    %72 = arith.addf %62, %71 : vector<8x128xf32>
    %cst_17 = arith.constant -0.533333361 : f32
    %73 = vector.broadcast %cst_17 : f32 to vector<8x128xf32>
    %74 = arith.subf %0, %73 : vector<8x128xf32>
    %75 = vector.extract_strided_slice %1 {offsets = [0, 7], sizes = [8, 1], strides = [1, 1]} : vector<8x128xf32> to vector<8x1xf32>
    %76 = arith.mulf %74, %74 : vector<8x128xf32>
    %cst_18 = arith.constant -1.125000e+02 : f32
    %77 = vector.broadcast %cst_18 : f32 to vector<8x128xf32>
    %78 = arith.mulf %76, %77 : vector<8x128xf32>
    %79 = math.exp %78 : vector<8x128xf32>
    %80 = vector.broadcast %75 : vector<8x1xf32> to vector<8x128xf32>
    %81 = arith.mulf %80, %79 : vector<8x128xf32>
    %82 = arith.addf %72, %81 : vector<8x128xf32>
    %cst_19 = arith.constant -0.466666669 : f32
    %83 = vector.broadcast %cst_19 : f32 to vector<8x128xf32>
    %84 = arith.subf %0, %83 : vector<8x128xf32>
    %85 = vector.extract_strided_slice %1 {offsets = [0, 8], sizes = [8, 1], strides = [1, 1]} : vector<8x128xf32> to vector<8x1xf32>
    %86 = arith.mulf %84, %84 : vector<8x128xf32>
    %cst_20 = arith.constant -1.125000e+02 : f32
    %87 = vector.broadcast %cst_20 : f32 to vector<8x128xf32>
    %88 = arith.mulf %86, %87 : vector<8x128xf32>
    %89 = math.exp %88 : vector<8x128xf32>
    %90 = vector.broadcast %85 : vector<8x1xf32> to vector<8x128xf32>
    %91 = arith.mulf %90, %89 : vector<8x128xf32>
    %92 = arith.addf %82, %91 : vector<8x128xf32>
    %cst_21 = arith.constant -4.000000e-01 : f32
    %93 = vector.broadcast %cst_21 : f32 to vector<8x128xf32>
    %94 = arith.subf %0, %93 : vector<8x128xf32>
    %95 = vector.extract_strided_slice %1 {offsets = [0, 9], sizes = [8, 1], strides = [1, 1]} : vector<8x128xf32> to vector<8x1xf32>
    %96 = arith.mulf %94, %94 : vector<8x128xf32>
    %cst_22 = arith.constant -1.125000e+02 : f32
    %97 = vector.broadcast %cst_22 : f32 to vector<8x128xf32>
    %98 = arith.mulf %96, %97 : vector<8x128xf32>
    %99 = math.exp %98 : vector<8x128xf32>
    %100 = vector.broadcast %95 : vector<8x1xf32> to vector<8x128xf32>
    %101 = arith.mulf %100, %99 : vector<8x128xf32>
    %102 = arith.addf %92, %101 : vector<8x128xf32>
    %cst_23 = arith.constant -0.333333343 : f32
    %103 = vector.broadcast %cst_23 : f32 to vector<8x128xf32>
    %104 = arith.subf %0, %103 : vector<8x128xf32>
    %105 = vector.extract_strided_slice %1 {offsets = [0, 10], sizes = [8, 1], strides = [1, 1]} : vector<8x128xf32> to vector<8x1xf32>
    %106 = arith.mulf %104, %104 : vector<8x128xf32>
    %cst_24 = arith.constant -1.125000e+02 : f32
    %107 = vector.broadcast %cst_24 : f32 to vector<8x128xf32>
    %108 = arith.mulf %106, %107 : vector<8x128xf32>
    %109 = math.exp %108 : vector<8x128xf32>
    %110 = vector.broadcast %105 : vector<8x1xf32> to vector<8x128xf32>
    %111 = arith.mulf %110, %109 : vector<8x128xf32>
    %112 = arith.addf %102, %111 : vector<8x128xf32>
    %cst_25 = arith.constant -0.266666681 : f32
    %113 = vector.broadcast %cst_25 : f32 to vector<8x128xf32>
    %114 = arith.subf %0, %113 : vector<8x128xf32>
    %115 = vector.extract_strided_slice %1 {offsets = [0, 11], sizes = [8, 1], strides = [1, 1]} : vector<8x128xf32> to vector<8x1xf32>
    %116 = arith.mulf %114, %114 : vector<8x128xf32>
    %cst_26 = arith.constant -1.125000e+02 : f32
    %117 = vector.broadcast %cst_26 : f32 to vector<8x128xf32>
    %118 = arith.mulf %116, %117 : vector<8x128xf32>
    %119 = math.exp %118 : vector<8x128xf32>
    %120 = vector.broadcast %115 : vector<8x1xf32> to vector<8x128xf32>
    %121 = arith.mulf %120, %119 : vector<8x128xf32>
    %122 = arith.addf %112, %121 : vector<8x128xf32>
    %cst_27 = arith.constant -2.000000e-01 : f32
    %123 = vector.broadcast %cst_27 : f32 to vector<8x128xf32>
    %124 = arith.subf %0, %123 : vector<8x128xf32>
    %125 = vector.extract_strided_slice %1 {offsets = [0, 12], sizes = [8, 1], strides = [1, 1]} : vector<8x128xf32> to vector<8x1xf32>
    %126 = arith.mulf %124, %124 : vector<8x128xf32>
    %cst_28 = arith.constant -1.125000e+02 : f32
    %127 = vector.broadcast %cst_28 : f32 to vector<8x128xf32>
    %128 = arith.mulf %126, %127 : vector<8x128xf32>
    %129 = math.exp %128 : vector<8x128xf32>
    %130 = vector.broadcast %125 : vector<8x1xf32> to vector<8x128xf32>
    %131 = arith.mulf %130, %129 : vector<8x128xf32>
    %132 = arith.addf %122, %131 : vector<8x128xf32>
    %cst_29 = arith.constant -0.13333334 : f32
    %133 = vector.broadcast %cst_29 : f32 to vector<8x128xf32>
    %134 = arith.subf %0, %133 : vector<8x128xf32>
    %135 = vector.extract_strided_slice %1 {offsets = [0, 13], sizes = [8, 1], strides = [1, 1]} : vector<8x128xf32> to vector<8x1xf32>
    %136 = arith.mulf %134, %134 : vector<8x128xf32>
    %cst_30 = arith.constant -1.125000e+02 : f32
    %137 = vector.broadcast %cst_30 : f32 to vector<8x128xf32>
    %138 = arith.mulf %136, %137 : vector<8x128xf32>
    %139 = math.exp %138 : vector<8x128xf32>
    %140 = vector.broadcast %135 : vector<8x1xf32> to vector<8x128xf32>
    %141 = arith.mulf %140, %139 : vector<8x128xf32>
    %142 = arith.addf %132, %141 : vector<8x128xf32>
    %cst_31 = arith.constant -0.0666666701 : f32
    %143 = vector.broadcast %cst_31 : f32 to vector<8x128xf32>
    %144 = arith.subf %0, %143 : vector<8x128xf32>
    %145 = vector.extract_strided_slice %1 {offsets = [0, 14], sizes = [8, 1], strides = [1, 1]} : vector<8x128xf32> to vector<8x1xf32>
    %146 = arith.mulf %144, %144 : vector<8x128xf32>
    %cst_32 = arith.constant -1.125000e+02 : f32
    %147 = vector.broadcast %cst_32 : f32 to vector<8x128xf32>
    %148 = arith.mulf %146, %147 : vector<8x128xf32>
    %149 = math.exp %148 : vector<8x128xf32>
    %150 = vector.broadcast %145 : vector<8x1xf32> to vector<8x128xf32>
    %151 = arith.mulf %150, %149 : vector<8x128xf32>
    %152 = arith.addf %142, %151 : vector<8x128xf32>
    %cst_33 = arith.constant 0.000000e+00 : f32
    %153 = vector.broadcast %cst_33 : f32 to vector<8x128xf32>
    %154 = arith.subf %0, %153 : vector<8x128xf32>
    %155 = vector.extract_strided_slice %1 {offsets = [0, 15], sizes = [8, 1], strides = [1, 1]} : vector<8x128xf32> to vector<8x1xf32>
    %156 = arith.mulf %154, %154 : vector<8x128xf32>
    %cst_34 = arith.constant -1.125000e+02 : f32
    %157 = vector.broadcast %cst_34 : f32 to vector<8x128xf32>
    %158 = arith.mulf %156, %157 : vector<8x128xf32>
    %159 = math.exp %158 : vector<8x128xf32>
    %160 = vector.broadcast %155 : vector<8x1xf32> to vector<8x128xf32>
    %161 = arith.mulf %160, %159 : vector<8x128xf32>
    %162 = arith.addf %152, %161 : vector<8x128xf32>
    %cst_35 = arith.constant 0.0666666701 : f32
    %163 = vector.broadcast %cst_35 : f32 to vector<8x128xf32>
    %164 = arith.subf %0, %163 : vector<8x128xf32>
    %165 = vector.extract_strided_slice %1 {offsets = [0, 16], sizes = [8, 1], strides = [1, 1]} : vector<8x128xf32> to vector<8x1xf32>
    %166 = arith.mulf %164, %164 : vector<8x128xf32>
    %cst_36 = arith.constant -1.125000e+02 : f32
    %167 = vector.broadcast %cst_36 : f32 to vector<8x128xf32>
    %168 = arith.mulf %166, %167 : vector<8x128xf32>
    %169 = math.exp %168 : vector<8x128xf32>
    %170 = vector.broadcast %165 : vector<8x1xf32> to vector<8x128xf32>
    %171 = arith.mulf %170, %169 : vector<8x128xf32>
    %172 = arith.addf %162, %171 : vector<8x128xf32>
    %cst_37 = arith.constant 0.13333334 : f32
    %173 = vector.broadcast %cst_37 : f32 to vector<8x128xf32>
    %174 = arith.subf %0, %173 : vector<8x128xf32>
    %175 = vector.extract_strided_slice %1 {offsets = [0, 17], sizes = [8, 1], strides = [1, 1]} : vector<8x128xf32> to vector<8x1xf32>
    %176 = arith.mulf %174, %174 : vector<8x128xf32>
    %cst_38 = arith.constant -1.125000e+02 : f32
    %177 = vector.broadcast %cst_38 : f32 to vector<8x128xf32>
    %178 = arith.mulf %176, %177 : vector<8x128xf32>
    %179 = math.exp %178 : vector<8x128xf32>
    %180 = vector.broadcast %175 : vector<8x1xf32> to vector<8x128xf32>
    %181 = arith.mulf %180, %179 : vector<8x128xf32>
    %182 = arith.addf %172, %181 : vector<8x128xf32>
    %cst_39 = arith.constant 2.000000e-01 : f32
    %183 = vector.broadcast %cst_39 : f32 to vector<8x128xf32>
    %184 = arith.subf %0, %183 : vector<8x128xf32>
    %185 = vector.extract_strided_slice %1 {offsets = [0, 18], sizes = [8, 1], strides = [1, 1]} : vector<8x128xf32> to vector<8x1xf32>
    %186 = arith.mulf %184, %184 : vector<8x128xf32>
    %cst_40 = arith.constant -1.125000e+02 : f32
    %187 = vector.broadcast %cst_40 : f32 to vector<8x128xf32>
    %188 = arith.mulf %186, %187 : vector<8x128xf32>
    %189 = math.exp %188 : vector<8x128xf32>
    %190 = vector.broadcast %185 : vector<8x1xf32> to vector<8x128xf32>
    %191 = arith.mulf %190, %189 : vector<8x128xf32>
    %192 = arith.addf %182, %191 : vector<8x128xf32>
    %cst_41 = arith.constant 0.266666681 : f32
    %193 = vector.broadcast %cst_41 : f32 to vector<8x128xf32>
    %194 = arith.subf %0, %193 : vector<8x128xf32>
    %195 = vector.extract_strided_slice %1 {offsets = [0, 19], sizes = [8, 1], strides = [1, 1]} : vector<8x128xf32> to vector<8x1xf32>
    %196 = arith.mulf %194, %194 : vector<8x128xf32>
    %cst_42 = arith.constant -1.125000e+02 : f32
    %197 = vector.broadcast %cst_42 : f32 to vector<8x128xf32>
    %198 = arith.mulf %196, %197 : vector<8x128xf32>
    %199 = math.exp %198 : vector<8x128xf32>
    %200 = vector.broadcast %195 : vector<8x1xf32> to vector<8x128xf32>
    %201 = arith.mulf %200, %199 : vector<8x128xf32>
    %202 = arith.addf %192, %201 : vector<8x128xf32>
    %cst_43 = arith.constant 0.333333343 : f32
    %203 = vector.broadcast %cst_43 : f32 to vector<8x128xf32>
    %204 = arith.subf %0, %203 : vector<8x128xf32>
    %205 = vector.extract_strided_slice %1 {offsets = [0, 20], sizes = [8, 1], strides = [1, 1]} : vector<8x128xf32> to vector<8x1xf32>
    %206 = arith.mulf %204, %204 : vector<8x128xf32>
    %cst_44 = arith.constant -1.125000e+02 : f32
    %207 = vector.broadcast %cst_44 : f32 to vector<8x128xf32>
    %208 = arith.mulf %206, %207 : vector<8x128xf32>
    %209 = math.exp %208 : vector<8x128xf32>
    %210 = vector.broadcast %205 : vector<8x1xf32> to vector<8x128xf32>
    %211 = arith.mulf %210, %209 : vector<8x128xf32>
    %212 = arith.addf %202, %211 : vector<8x128xf32>
    %cst_45 = arith.constant 4.000000e-01 : f32
    %213 = vector.broadcast %cst_45 : f32 to vector<8x128xf32>
    %214 = arith.subf %0, %213 : vector<8x128xf32>
    %215 = vector.extract_strided_slice %1 {offsets = [0, 21], sizes = [8, 1], strides = [1, 1]} : vector<8x128xf32> to vector<8x1xf32>
    %216 = arith.mulf %214, %214 : vector<8x128xf32>
    %cst_46 = arith.constant -1.125000e+02 : f32
    %217 = vector.broadcast %cst_46 : f32 to vector<8x128xf32>
    %218 = arith.mulf %216, %217 : vector<8x128xf32>
    %219 = math.exp %218 : vector<8x128xf32>
    %220 = vector.broadcast %215 : vector<8x1xf32> to vector<8x128xf32>
    %221 = arith.mulf %220, %219 : vector<8x128xf32>
    %222 = arith.addf %212, %221 : vector<8x128xf32>
    %cst_47 = arith.constant 0.466666669 : f32
    %223 = vector.broadcast %cst_47 : f32 to vector<8x128xf32>
    %224 = arith.subf %0, %223 : vector<8x128xf32>
    %225 = vector.extract_strided_slice %1 {offsets = [0, 22], sizes = [8, 1], strides = [1, 1]} : vector<8x128xf32> to vector<8x1xf32>
    %226 = arith.mulf %224, %224 : vector<8x128xf32>
    %cst_48 = arith.constant -1.125000e+02 : f32
    %227 = vector.broadcast %cst_48 : f32 to vector<8x128xf32>
    %228 = arith.mulf %226, %227 : vector<8x128xf32>
    %229 = math.exp %228 : vector<8x128xf32>
    %230 = vector.broadcast %225 : vector<8x1xf32> to vector<8x128xf32>
    %231 = arith.mulf %230, %229 : vector<8x128xf32>
    %232 = arith.addf %222, %231 : vector<8x128xf32>
    %cst_49 = arith.constant 0.533333361 : f32
    %233 = vector.broadcast %cst_49 : f32 to vector<8x128xf32>
    %234 = arith.subf %0, %233 : vector<8x128xf32>
    %235 = vector.extract_strided_slice %1 {offsets = [0, 23], sizes = [8, 1], strides = [1, 1]} : vector<8x128xf32> to vector<8x1xf32>
    %236 = arith.mulf %234, %234 : vector<8x128xf32>
    %cst_50 = arith.constant -1.125000e+02 : f32
    %237 = vector.broadcast %cst_50 : f32 to vector<8x128xf32>
    %238 = arith.mulf %236, %237 : vector<8x128xf32>
    %239 = math.exp %238 : vector<8x128xf32>
    %240 = vector.broadcast %235 : vector<8x1xf32> to vector<8x128xf32>
    %241 = arith.mulf %240, %239 : vector<8x128xf32>
    %242 = arith.addf %232, %241 : vector<8x128xf32>
    %cst_51 = arith.constant 6.000000e-01 : f32
    %243 = vector.broadcast %cst_51 : f32 to vector<8x128xf32>
    %244 = arith.subf %0, %243 : vector<8x128xf32>
    %245 = vector.extract_strided_slice %1 {offsets = [0, 24], sizes = [8, 1], strides = [1, 1]} : vector<8x128xf32> to vector<8x1xf32>
    %246 = arith.mulf %244, %244 : vector<8x128xf32>
    %cst_52 = arith.constant -1.125000e+02 : f32
    %247 = vector.broadcast %cst_52 : f32 to vector<8x128xf32>
    %248 = arith.mulf %246, %247 : vector<8x128xf32>
    %249 = math.exp %248 : vector<8x128xf32>
    %250 = vector.broadcast %245 : vector<8x1xf32> to vector<8x128xf32>
    %251 = arith.mulf %250, %249 : vector<8x128xf32>
    %252 = arith.addf %242, %251 : vector<8x128xf32>
    %cst_53 = arith.constant 0.666666686 : f32
    %253 = vector.broadcast %cst_53 : f32 to vector<8x128xf32>
    %254 = arith.subf %0, %253 : vector<8x128xf32>
    %255 = vector.extract_strided_slice %1 {offsets = [0, 25], sizes = [8, 1], strides = [1, 1]} : vector<8x128xf32> to vector<8x1xf32>
    %256 = arith.mulf %254, %254 : vector<8x128xf32>
    %cst_54 = arith.constant -1.125000e+02 : f32
    %257 = vector.broadcast %cst_54 : f32 to vector<8x128xf32>
    %258 = arith.mulf %256, %257 : vector<8x128xf32>
    %259 = math.exp %258 : vector<8x128xf32>
    %260 = vector.broadcast %255 : vector<8x1xf32> to vector<8x128xf32>
    %261 = arith.mulf %260, %259 : vector<8x128xf32>
    %262 = arith.addf %252, %261 : vector<8x128xf32>
    %cst_55 = arith.constant 0.733333349 : f32
    %263 = vector.broadcast %cst_55 : f32 to vector<8x128xf32>
    %264 = arith.subf %0, %263 : vector<8x128xf32>
    %265 = vector.extract_strided_slice %1 {offsets = [0, 26], sizes = [8, 1], strides = [1, 1]} : vector<8x128xf32> to vector<8x1xf32>
    %266 = arith.mulf %264, %264 : vector<8x128xf32>
    %cst_56 = arith.constant -1.125000e+02 : f32
    %267 = vector.broadcast %cst_56 : f32 to vector<8x128xf32>
    %268 = arith.mulf %266, %267 : vector<8x128xf32>
    %269 = math.exp %268 : vector<8x128xf32>
    %270 = vector.broadcast %265 : vector<8x1xf32> to vector<8x128xf32>
    %271 = arith.mulf %270, %269 : vector<8x128xf32>
    %272 = arith.addf %262, %271 : vector<8x128xf32>
    %cst_57 = arith.constant 8.000000e-01 : f32
    %273 = vector.broadcast %cst_57 : f32 to vector<8x128xf32>
    %274 = arith.subf %0, %273 : vector<8x128xf32>
    %275 = vector.extract_strided_slice %1 {offsets = [0, 27], sizes = [8, 1], strides = [1, 1]} : vector<8x128xf32> to vector<8x1xf32>
    %276 = arith.mulf %274, %274 : vector<8x128xf32>
    %cst_58 = arith.constant -1.125000e+02 : f32
    %277 = vector.broadcast %cst_58 : f32 to vector<8x128xf32>
    %278 = arith.mulf %276, %277 : vector<8x128xf32>
    %279 = math.exp %278 : vector<8x128xf32>
    %280 = vector.broadcast %275 : vector<8x1xf32> to vector<8x128xf32>
    %281 = arith.mulf %280, %279 : vector<8x128xf32>
    %282 = arith.addf %272, %281 : vector<8x128xf32>
    %cst_59 = arith.constant 0.866666674 : f32
    %283 = vector.broadcast %cst_59 : f32 to vector<8x128xf32>
    %284 = arith.subf %0, %283 : vector<8x128xf32>
    %285 = vector.extract_strided_slice %1 {offsets = [0, 28], sizes = [8, 1], strides = [1, 1]} : vector<8x128xf32> to vector<8x1xf32>
    %286 = arith.mulf %284, %284 : vector<8x128xf32>
    %cst_60 = arith.constant -1.125000e+02 : f32
    %287 = vector.broadcast %cst_60 : f32 to vector<8x128xf32>
    %288 = arith.mulf %286, %287 : vector<8x128xf32>
    %289 = math.exp %288 : vector<8x128xf32>
    %290 = vector.broadcast %285 : vector<8x1xf32> to vector<8x128xf32>
    %291 = arith.mulf %290, %289 : vector<8x128xf32>
    %292 = arith.addf %282, %291 : vector<8x128xf32>
    %cst_61 = arith.constant 0.933333337 : f32
    %293 = vector.broadcast %cst_61 : f32 to vector<8x128xf32>
    %294 = arith.subf %0, %293 : vector<8x128xf32>
    %295 = vector.extract_strided_slice %1 {offsets = [0, 29], sizes = [8, 1], strides = [1, 1]} : vector<8x128xf32> to vector<8x1xf32>
    %296 = arith.mulf %294, %294 : vector<8x128xf32>
    %cst_62 = arith.constant -1.125000e+02 : f32
    %297 = vector.broadcast %cst_62 : f32 to vector<8x128xf32>
    %298 = arith.mulf %296, %297 : vector<8x128xf32>
    %299 = math.exp %298 : vector<8x128xf32>
    %300 = vector.broadcast %295 : vector<8x1xf32> to vector<8x128xf32>
    %301 = arith.mulf %300, %299 : vector<8x128xf32>
    %302 = arith.addf %292, %301 : vector<8x128xf32>
    %cst_63 = arith.constant 1.000000e+00 : f32
    %303 = vector.broadcast %cst_63 : f32 to vector<8x128xf32>
    %304 = arith.subf %0, %303 : vector<8x128xf32>
    %305 = vector.extract_strided_slice %1 {offsets = [0, 30], sizes = [8, 1], strides = [1, 1]} : vector<8x128xf32> to vector<8x1xf32>
    %306 = arith.mulf %304, %304 : vector<8x128xf32>
    %cst_64 = arith.constant -1.125000e+02 : f32
    %307 = vector.broadcast %cst_64 : f32 to vector<8x128xf32>
    %308 = arith.mulf %306, %307 : vector<8x128xf32>
    %309 = math.exp %308 : vector<8x128xf32>
    %310 = vector.broadcast %305 : vector<8x1xf32> to vector<8x128xf32>
    %311 = arith.mulf %310, %309 : vector<8x128xf32>
    %312 = arith.addf %302, %311 : vector<8x128xf32>
    %c0_65 = arith.constant 0 : index
    %c0_66 = arith.constant 0 : index
    %313 = vector.load %arg4[%c0_65, %c0_66] : memref<8x128xf32, #tpu.memory_space<vmem>>, vector<8x128xf32>
    tpu.vector_store %arg4[%c0_65, %c0_66], %312 {strides = array<i32>} : memref<8x128xf32, #tpu.memory_space<vmem>>, vector<8x128xf32>,
    return
  }
  func.func @transform_0(%arg0: i32, %arg1: i32) -> (i32, i32) {
    %c0_i32 = arith.constant 0 : i32
    return %arg0, %arg1 : i32, i32
  }
  func.func @transform_1(%arg0: i32, %arg1: i32) -> (i32, i32) {
    %c0_i32 = arith.constant 0 : i32
    %c0_i32_0 = arith.constant 0 : i32
    return %arg0, %c0_i32 : i32, i32
  }
  func.func @transform_2(%arg0: i32, %arg1: i32) -> (i32, i32) {
    %c0_i32 = arith.constant 0 : i32
    return %arg0, %arg1 : i32, i32
  }
}

</mosaic_0001>

<llo_original>
// kernel: tpu_custom_call.1
$region0: #{tpu_custom_call.1}
  #allocation0 [shape = 'u32[]', space=smem, size = 0x4, offset = 0x4, fixed_abs, tag = 'smem constant byte address 0x4 - core index']
  #allocation1 [shape = 'u32[144,128]{1,0:T(1,128)}', space=vmem, size = 0x12000, scoped, tag = 'internal scratch']
  %s0 = inlined_call_operand.hbm [shape: f32[8,256], index: 0, kind: input, shape index: {}]
  %s1 = inlined_call_operand.hbm [shape: f32[8,128], index: 1, kind: input, shape index: {}]
  %s2 = inlined_call_operand.hbm [shape: f32[8,256], index: 2, kind: output, shape index: {}]
  %s3 = sld [smem:[#allocation0]]
  $region49: #{tpu_custom_call.1} parent=0
    _
  %s5 = ssub.s32 1, %s3
  %s6 = scalar_select 0, %s5, %s3
  $region1: #{tpu_custom_call.1} parent=0
    #allocation2 [shape = 'u8[8192]{0}', space=vmem, size = 0x2000, scoped, tag = 'input window, operand 0']
    #allocation3 [shape = 's32[2]{0}', space=sflag, size = 0x8, scoped, tag = 'scoped memory for tpu_custom_call.1']
    #allocation4 [shape = 's32[2]{0}', space=sflag, size = 0x8, scoped, tag = 'scoped memory for tpu_custom_call.1']
    #allocation5 [shape = 'u8[4096]{0}', space=vmem, size = 0x1000, scoped, tag = 'input window, operand 1, single buffered']
    #allocation6 [shape = 's32[1]{0}', space=sflag, size = 0x4, scoped, tag = 'scoped memory for tpu_custom_call.1']
    #allocation7 [shape = 'u8[8192]{0}', space=vmem, size = 0x2000, scoped, tag = 'output window, operand 0']
    %7 = vsyncpa [#allocation3], 0
    %s8 = scalar_lea.sflag [#allocation3], 1
    %9 = vsyncpa %s8, 0
    %10 = vsyncpa [#allocation6], 0
    %11 = vsyncpa [#allocation4], 0
    %s12 = scalar_lea.sflag [#allocation4], 1
    %13 = vsyncpa %s12, 0
    loop: start=0, step=1, limit=4
    $region2: #{tpu_custom_call.1} parent=1 // loop_pre_header
      _
    $region3: #{tpu_custom_call.1} parent=1 // loop_header
      %s15 = sphi 0, %s19
      %p16 = scmp.ge.s32.totalorder %s15, 4
      %s22 = sphi 0, %s34
      %s23 = sphi 0, %s30
      %s24 = sphi 0, %s22
      %s25 = sphi 0, %s23
      %s26 = sphi 0, %s24
      %s27 = sphi 0, %s25
      %s39 = sphi 0, %s41
      %s42 = sphi 0, %s39
      %s43 = sphi 0, %s42
      %s59 = sphi 0, %s43
      %s65 = sphi 0, %s67
      %s68 = sphi 0, %s65
      %s69 = sphi 0, %s68
      %s85 = sphi 0, %s69
      %s93 = sphi 0, %s95
      %s96 = sphi 0, %s93
      %s97 = sphi 0, %s96
      %s113 = sphi 0, %s97
    $region4: #{tpu_custom_call.1} parent=1 // loop_header_branch
      %18 = sbr.rel (%p16) target = $region8
    $region5: #{tpu_custom_call.1} parent=1 // loop_body
      %s20 = ssub.s32 %s15, 1
      %s21 = ssub.s32 %s15, 2
      %s28 = sadd.s32 1, %s23
      %p29 = scmp.ge.s32.totalorder %s28, 2
      %s30 = scalar_select %p29, 0, %s28
      %s31 = sadd.s32 1, %s22
      %s32 = scalar_select %p29, %s31, %s22
      %p33 = scmp.ge.s32.totalorder %s32, 1
      %s34 = scalar_select %p33, 0, %s32
      %s35 = ssub.s32 %s22, %s34
      %s36 = ssub.s32 %s23, %s30
      %s37 = sor.u32 %s35, %s36
      %p38 = scmp.eq.s32.totalorder %s37, 0
      %s40 = sadd.s32 %s39, 1
      %s41 = scalar_select %p38, %s39, %s40
      %p44 = pneg %p38
      %p45 = scmp.eq.s32.totalorder %s15, 1
      %p46 = por %p44, %p45
      %p47 = scmp.ne.s32.totalorder %s39, %s42
      %p48 = scmp.eq.s32.totalorder %s15, 0
      %p49 = por %p47, %p48
      %p50 = scmp.ne.s32.totalorder %s39, %s42
      %p51 = scmp.eq.s32.totalorder %s20, 1
      %p52 = por %p50, %p51
      %p53 = scmp.ne.s32.totalorder %s42, %s43
      %p54 = scmp.eq.s32.totalorder %s20, 0
      %p55 = por %p53, %p54
      %p56 = scmp.ne.s32.totalorder %s42, %s43
      %p57 = scmp.eq.s32.totalorder %s21, 1
      %p58 = por %p56, %p57
      %p60 = scmp.ne.s32.totalorder %s43, %s59
      %p61 = scmp.eq.s32.totalorder %s21, 0
      %p62 = por %p60, %p61
      %s63 = ssub.s32 %s22, %s34
      %p64 = scmp.eq.s32.totalorder %s63, 0
      %s66 = sadd.s32 %s65, 1
      %s67 = scalar_select %p64, %s65, %s66
      %p70 = pneg %p64
      %p71 = scmp.eq.s32.totalorder %s15, 1
      %p72 = por %p70, %p71
      %p73 = scmp.ne.s32.totalorder %s65, %s68
      %p74 = scmp.eq.s32.totalorder %s15, 0
      %p75 = por %p73, %p74
      %p76 = scmp.ne.s32.totalorder %s65, %s68
      %p77 = scmp.eq.s32.totalorder %s20, 1
      %p78 = por %p76, %p77
      %p79 = scmp.ne.s32.totalorder %s68, %s69
      %p80 = scmp.eq.s32.totalorder %s20, 0
      %p81 = por %p79, %p80
      %p82 = scmp.ne.s32.totalorder %s68, %s69
      %p83 = scmp.eq.s32.totalorder %s21, 1
      %p84 = por %p82, %p83
      %p86 = scmp.ne.s32.totalorder %s69, %s85
      %p87 = scmp.eq.s32.totalorder %s21, 0
      %p88 = por %p86, %p87
      %s89 = ssub.s32 %s22, %s34
      %s90 = ssub.s32 %s23, %s30
      %s91 = sor.u32 %s89, %s90
      %p92 = scmp.eq.s32.totalorder %s91, 0
      %s94 = sadd.s32 %s93, 1
      %s95 = scalar_select %p92, %s93, %s94
      %p98 = pneg %p92
      %p99 = scmp.eq.s32.totalorder %s15, 1
      %p100 = por %p98, %p99
      %p101 = scmp.ne.s32.totalorder %s93, %s96
      %p102 = scmp.eq.s32.totalorder %s15, 0
      %p103 = por %p101, %p102
      %p104 = scmp.ne.s32.totalorder %s93, %s96
      %p105 = scmp.eq.s32.totalorder %s20, 1
      %p106 = por %p104, %p105
      %p107 = scmp.ne.s32.totalorder %s96, %s97
      %p108 = scmp.eq.s32.totalorder %s20, 0
      %p109 = por %p107, %p108
      %p110 = scmp.ne.s32.totalorder %s96, %s97
      %p111 = scmp.eq.s32.totalorder %s21, 1
      %p112 = por %p110, %p111
      %p114 = scmp.ne.s32.totalorder %s97, %s113
      %p115 = scmp.eq.s32.totalorder %s21, 0
      %p116 = por %p114, %p115
      %p117 = scmp.le.s32.totalorder 1, %s15
      %p118 = scmp.lt.s32.totalorder %s15, 3
      %p119 = pnand %p117, %p118
      %p120 = pneg %p119
      // Predicated region
      $region9: #{tpu_custom_call.1} parent=5 // pred_check
        _
      $region10: #{tpu_custom_call.1} parent=5 // pred_check_branch
        %122 = sbr.rel (%p119) target = $region12
      $region11: #{tpu_custom_call.1} parent=5 // pred_region
        %s123 = ssub.s32 %s15, 1
        // Predicated region
        $region13: #{tpu_custom_call.1} parent=11 // pred_check
          %p124 = pneg %p81
        $region14: #{tpu_custom_call.1} parent=11 // pred_check_branch
          %126 = sbr.rel (%p124) target = $region16
        $region15: #{tpu_custom_call.1} parent=11 // pred_region
          %s128 = ssub.s32 128, 128
          %129 = vsyncadd [#allocation6], %s128
          %s130 = smul.addr %s24, 128
          %s131 = scalar_lea.hbm %s1, %s130
          %s133 = sshll.u32 [#allocation5], 4
          %s134 = int_to_ptr.vmem [resolvable:$true] %s133
          %136 = dma.hbm_to_vmem [thread:$0]  %s131, 128, %s134, [#allocation6]
        $region16: #{tpu_custom_call.1} parent=11 // pred_fallthru
          _
      $region12: #{tpu_custom_call.1} parent=5 // pred_fallthru
        _
      %p137 = scmp.lt.s32.totalorder %s15, 2
      // Predicated region
      $region17: #{tpu_custom_call.1} parent=5 // pred_check
        %p138 = pneg %p137
      $region18: #{tpu_custom_call.1} parent=5 // pred_check_branch
        %140 = sbr.rel (%p138) target = $region20
      $region19: #{tpu_custom_call.1} parent=5 // pred_region
        // Predicated region
        $region21: #{tpu_custom_call.1} parent=19 // pred_check
          %p141 = pneg %p49
        $region22: #{tpu_custom_call.1} parent=19 // pred_check_branch
          %143 = sbr.rel (%p141) target = $region24
        $region23: #{tpu_custom_call.1} parent=19 // pred_region
          %s144 = sand.u32 %s39, 1
          %s145 = scalar_lea.sflag [#allocation3], %s144
          %s146 = sand.u32 %s39, 1
          %s147 = smul.addr %s146, 8
          %s148 = scalar_lea.vmem [#allocation2], %s147
          %s150 = ssub.s32 128, 128
          %151 = vsyncadd %s145, %s150
          %s152 = smul.addr %s22, 2
          %s153 = sadd.s32 %s23, %s152
          %s154 = smul.addr %s153, 128
          %s155 = scalar_lea.hbm %s0, %s154
          %s157 = sshll.u32 %s148, 4
          %s158 = int_to_ptr.vmem [resolvable:$true] %s157
          %160 = dma.hbm_to_vmem [thread:$0]  %s155, 128, %s158, %s145
        $region24: #{tpu_custom_call.1} parent=19 // pred_fallthru
          _
      $region20: #{tpu_custom_call.1} parent=5 // pred_fallthru
        _
      %p161 = scmp.le.s32.totalorder 1, %s15
      %p162 = scmp.lt.s32.totalorder %s15, 3
      %p163 = pnand %p161, %p162
      %p164 = pneg %p163
      // Predicated region
      $region25: #{tpu_custom_call.1} parent=5 // pred_check
        _
      $region26: #{tpu_custom_call.1} parent=5 // pred_check_branch
        %166 = sbr.rel (%p163) target = $region28
      $region27: #{tpu_custom_call.1} parent=5 // pred_region
        %s167 = ssub.s32 %s15, 1
        %s168 = sand.u32 %s42, 1
        %s169 = scalar_lea.sflag [#allocation3], %s168
        %s170 = sand.u32 %s42, 1
        %s171 = smul.addr %s170, 8
        %s172 = scalar_lea.vmem [#allocation2], %s171
        // Predicated region
        $region29: #{tpu_custom_call.1} parent=27 // pred_check
          %p173 = pneg %p55
        $region30: #{tpu_custom_call.1} parent=27 // pred_check_branch
          %175 = sbr.rel (%p173) target = $region32
        $region31: #{tpu_custom_call.1} parent=27 // pred_region
          %176 = dma.done %s169, 128
        $region32: #{tpu_custom_call.1} parent=27 // pred_fallthru
          _
        // Predicated region
        $region33: #{tpu_custom_call.1} parent=27 // pred_check
          %p177 = pneg %p81
        $region34: #{tpu_custom_call.1} parent=27 // pred_check_branch
          %179 = sbr.rel (%p177) target = $region36
        $region35: #{tpu_custom_call.1} parent=27 // pred_region
          %180 = dma.done [#allocation6], 128
        $region36: #{tpu_custom_call.1} parent=27 // pred_fallthru
          _
        %s181 = sand.u32 %s42, 1
        %s182 = scalar_lea.sflag [#allocation3], %s181
        %s183 = sand.u32 %s42, 1
        %s184 = smul.addr %s183, 8
        %s185 = scalar_lea.vmem [#allocation2], %s184
        %p186 = pneg %p55
        %p187 = pneg %p52
        %p188 = pneg %p81
        %p189 = pneg %p78
        %p190 = pneg %p109
        %p191 = pneg %p106
        %s192 = sand.u32 %s96, 1
        %s193 = scalar_lea.sflag [#allocation4], %s192
        %s194 = sand.u32 %s96, 1
        %s195 = smul.addr %s194, 8
        %s196 = scalar_lea.vmem [#allocation7], %s195
        %v197 = vld [vmem:[%s172] sm:$0xff]
        %v198 = vld [vmem:[#allocation5] sm:$0xff]
        %v199 = vsub.f32 %v197, -1.0
        %v200 = vmul.f32 %v199, %v199
        %v201 = vmul.f32 %v200, -112.5
        %v202 = vmul.f32 %v201, 1.442695
        %v203 = vpow.pop %v202
        %205 = vset.pattern.permute.xlu0 0
        %206 = vperm.xlu0 %205, %v198
        %v207 = vpop.permute.xlu0 %206
        %v209 = vmul.f32 %v207, %v203
        %v210 = vadd.f32 %v209, 0.0
        %v211 = vsub.f32 %v197, -0.93333334
        %v212 = vmul.f32 %v211, %v211
        %v213 = vmul.f32 %v212, -112.5
        %v214 = vmul.f32 %v213, 1.442695
        %v215 = vpow.pop %v214
        %216 = vset.pattern.permute.xlu0 1
        %217 = vperm.xlu0 %216, %v198
        %v218 = vpop.permute.xlu0 %217
        %v220 = vmul.f32 %v218, %v215
        %v221 = vadd.f32 %v210, %v220
        %v222 = vsub.f32 %v197, -0.8666667
        %v223 = vmul.f32 %v222, %v222
        %v224 = vmul.f32 %v223, -112.5
        %v225 = vmul.f32 %v224, 1.442695
        %v226 = vpow.pop %v225
        %227 = vset.pattern.permute.xlu0 2
        %228 = vperm.xlu0 %227, %v198
        %v229 = vpop.permute.xlu0 %228
        %v231 = vmul.f32 %v229, %v226
        %v232 = vadd.f32 %v221, %v231
        %v233 = vsub.f32 %v197, -0.8
        %v234 = vmul.f32 %v233, %v233
        %v235 = vmul.f32 %v234, -112.5
        %v236 = vmul.f32 %v235, 1.442695
        %v237 = vpow.pop %v236
        %238 = vset.pattern.permute.xlu0 3
        %239 = vperm.xlu0 %238, %v198
        %v240 = vpop.permute.xlu0 %239
        %v242 = vmul.f32 %v240, %v237
        %v243 = vadd.f32 %v232, %v242
        %v244 = vsub.f32 %v197, -0.73333335
        %v245 = vmul.f32 %v244, %v244
        %v246 = vmul.f32 %v245, -112.5
        %v247 = vmul.f32 %v246, 1.442695
        %v248 = vpow.pop %v247
        %249 = vset.pattern.permute.xlu0 4
        %250 = vperm.xlu0 %249, %v198
        %v251 = vpop.permute.xlu0 %250
        %v253 = vmul.f32 %v251, %v248
        %v254 = vadd.f32 %v243, %v253
        %v255 = vsub.f32 %v197, -0.6666667
        %v256 = vmul.f32 %v255, %v255
        %v257 = vmul.f32 %v256, -112.5
        %v258 = vmul.f32 %v257, 1.442695
        %v259 = vpow.pop %v258
        %260 = vset.pattern.permute.xlu0 5
        %261 = vperm.xlu0 %260, %v198
        %v262 = vpop.permute.xlu0 %261
        %v264 = vmul.f32 %v262, %v259
        %v265 = vadd.f32 %v254, %v264
        %v266 = vsub.f32 %v197, -0.6
        %v267 = vmul.f32 %v266, %v266
        %v268 = vmul.f32 %v267, -112.5
        %v269 = vmul.f32 %v268, 1.442695
        %v270 = vpow.pop %v269
        %271 = vset.pattern.permute.xlu0 6
        %272 = vperm.xlu0 %271, %v198
        %v273 = vpop.permute.xlu0 %272
        %v275 = vmul.f32 %v273, %v270
        %v276 = vadd.f32 %v265, %v275
        %v277 = vsub.f32 %v197, -0.53333336
        %v278 = vmul.f32 %v277, %v277
        %v279 = vmul.f32 %v278, -112.5
        %v280 = vmul.f32 %v279, 1.442695
        %v281 = vpow.pop %v280
        %282 = vset.pattern.permute.xlu0 7
        %283 = vperm.xlu0 %282, %v198
        %v284 = vpop.permute.xlu0 %283
        %v286 = vmul.f32 %v284, %v281
        %v287 = vadd.f32 %v276, %v286
        %v288 = vsub.f32 %v197, -0.46666667
        %v289 = vmul.f32 %v288, %v288
        %v290 = vmul.f32 %v289, -112.5
        %v291 = vmul.f32 %v290, 1.442695
        %v292 = vpow.pop %v291
        %293 = vset.pattern.permute.xlu0 8
        %294 = vperm.xlu0 %293, %v198
        %v295 = vpop.permute.xlu0 %294
        %v297 = vmul.f32 %v295, %v292
        %v298 = vadd.f32 %v287, %v297
        %v299 = vsub.f32 %v197, -0.4
        %v300 = vmul.f32 %v299, %v299
        %v301 = vmul.f32 %v300, -112.5
        %v302 = vmul.f32 %v301, 1.442695
        %v303 = vpow.pop %v302
        %304 = vset.pattern.permute.xlu0 9
        %305 = vperm.xlu0 %304, %v198
        %v306 = vpop.permute.xlu0 %305
        %v308 = vmul.f32 %v306, %v303
        %v309 = vadd.f32 %v298, %v308
        %v310 = vsub.f32 %v197, -0.33333334
        %v311 = vmul.f32 %v310, %v310
        %v312 = vmul.f32 %v311, -112.5
        %v313 = vmul.f32 %v312, 1.442695
        %v314 = vpow.pop %v313
        %315 = vset.pattern.permute.xlu0 10
        %316 = vperm.xlu0 %315, %v198
        %v317 = vpop.permute.xlu0 %316
        %v319 = vmul.f32 %v317, %v314
        %v320 = vadd.f32 %v309, %v319
        %v321 = vsub.f32 %v197, -0.26666668
        %v322 = vmul.f32 %v321, %v321
        %v323 = vmul.f32 %v322, -112.5
        %v324 = vmul.f32 %v323, 1.442695
        %v325 = vpow.pop %v324
        %326 = vset.pattern.permute.xlu0 11
        %327 = vperm.xlu0 %326, %v198
        %v328 = vpop.permute.xlu0 %327
        %v330 = vmul.f32 %v328, %v325
        %v331 = vadd.f32 %v320, %v330
        %v332 = vsub.f32 %v197, -0.2
        %v333 = vmul.f32 %v332, %v332
        %v334 = vmul.f32 %v333, -112.5
        %v335 = vmul.f32 %v334, 1.442695
        %v336 = vpow.pop %v335
        %337 = vset.pattern.permute.xlu0 12
        %338 = vperm.xlu0 %337, %v198
        %v339 = vpop.permute.xlu0 %338
        %v341 = vmul.f32 %v339, %v336
        %v342 = vadd.f32 %v331, %v341
        %v343 = vsub.f32 %v197, -0.13333334
        %v344 = vmul.f32 %v343, %v343
        %v345 = vmul.f32 %v344, -112.5
        %v346 = vmul.f32 %v345, 1.442695
        %v347 = vpow.pop %v346
        %348 = vset.pattern.permute.xlu0 13
        %349 = vperm.xlu0 %348, %v198
        %v350 = vpop.permute.xlu0 %349
        %v352 = vmul.f32 %v350, %v347
        %v353 = vadd.f32 %v342, %v352
        %v354 = vsub.f32 %v197, -0.06666667
        %v355 = vmul.f32 %v354, %v354
        %v356 = vmul.f32 %v355, -112.5
        %v357 = vmul.f32 %v356, 1.442695
        %v358 = vpow.pop %v357
        %359 = vset.pattern.permute.xlu0 14
        %360 = vperm.xlu0 %359, %v198
        %v361 = vpop.permute.xlu0 %360
        %v363 = vmul.f32 %v361, %v358
        %v364 = vadd.f32 %v353, %v363
        %v365 = vmul.f32 %v197, %v197
        %v366 = vmul.f32 %v365, -112.5
        %v367 = vmul.f32 %v366, 1.442695
        %v368 = vpow.pop %v367
        %369 = vset.pattern.permute.xlu0 15
        %370 = vperm.xlu0 %369, %v198
        %v371 = vpop.permute.xlu0 %370
        %v373 = vmul.f32 %v371, %v368
        %v374 = vadd.f32 %v364, %v373
        %v375 = vsub.f32 %v197, 0.06666667
        %v376 = vmul.f32 %v375, %v375
        %v377 = vmul.f32 %v376, -112.5
        %v378 = vmul.f32 %v377, 1.442695
        %v379 = vpow.pop %v378
        %380 = vset.pattern.permute.xlu0 16
        %381 = vperm.xlu0 %380, %v198
        %v382 = vpop.permute.xlu0 %381
        %v384 = vmul.f32 %v382, %v379
        %v385 = vadd.f32 %v374, %v384
        %v386 = vsub.f32 %v197, 0.13333334
        %v387 = vmul.f32 %v386, %v386
        %v388 = vmul.f32 %v387, -112.5
        %v389 = vmul.f32 %v388, 1.442695
        %v390 = vpow.pop %v389
        %391 = vset.pattern.permute.xlu0 17
        %392 = vperm.xlu0 %391, %v198
        %v393 = vpop.permute.xlu0 %392
        %v395 = vmul.f32 %v393, %v390
        %v396 = vadd.f32 %v385, %v395
        %v397 = vsub.f32 %v197, 0.2
        %v398 = vmul.f32 %v397, %v397
        %v399 = vmul.f32 %v398, -112.5
        %v400 = vmul.f32 %v399, 1.442695
        %v401 = vpow.pop %v400
        %402 = vset.pattern.permute.xlu0 18
        %403 = vperm.xlu0 %402, %v198
        %v404 = vpop.permute.xlu0 %403
        %v406 = vmul.f32 %v404, %v401
        %v407 = vadd.f32 %v396, %v406
        %v408 = vsub.f32 %v197, 0.26666668
        %v409 = vmul.f32 %v408, %v408
        %v410 = vmul.f32 %v409, -112.5
        %v411 = vmul.f32 %v410, 1.442695
        %v412 = vpow.pop %v411
        %413 = vset.pattern.permute.xlu0 19
        %414 = vperm.xlu0 %413, %v198
        %v415 = vpop.permute.xlu0 %414
        %v417 = vmul.f32 %v415, %v412
        %v418 = vadd.f32 %v407, %v417
        %v419 = vsub.f32 %v197, 0.33333334
        %v420 = vmul.f32 %v419, %v419
        %v421 = vmul.f32 %v420, -112.5
        %v422 = vmul.f32 %v421, 1.442695
        %v423 = vpow.pop %v422
        %424 = vset.pattern.permute.xlu0 20
        %425 = vperm.xlu0 %424, %v198
        %v426 = vpop.permute.xlu0 %425
        %v428 = vmul.f32 %v426, %v423
        %v429 = vadd.f32 %v418, %v428
        %v430 = vsub.f32 %v197, 0.4
        %v431 = vmul.f32 %v430, %v430
        %v432 = vmul.f32 %v431, -112.5
        %v433 = vmul.f32 %v432, 1.442695
        %v434 = vpow.pop %v433
        %435 = vset.pattern.permute.xlu0 21
        %436 = vperm.xlu0 %435, %v198
        %v437 = vpop.permute.xlu0 %436
        %v439 = vmul.f32 %v437, %v434
        %v440 = vadd.f32 %v429, %v439
        %v441 = vsub.f32 %v197, 0.46666667
        %v442 = vmul.f32 %v441, %v441
        %v443 = vmul.f32 %v442, -112.5
        %v444 = vmul.f32 %v443, 1.442695
        %v445 = vpow.pop %v444
        %446 = vset.pattern.permute.xlu0 22
        %447 = vperm.xlu0 %446, %v198
        %v448 = vpop.permute.xlu0 %447
        %v450 = vmul.f32 %v448, %v445
        %v451 = vadd.f32 %v440, %v450
        %v452 = vsub.f32 %v197, 0.53333336
        %v453 = vmul.f32 %v452, %v452
        %v454 = vmul.f32 %v453, -112.5
        %v455 = vmul.f32 %v454, 1.442695
        %v456 = vpow.pop %v455
        %457 = vset.pattern.permute.xlu0 23
        %458 = vperm.xlu0 %457, %v198
        %v459 = vpop.permute.xlu0 %458
        %v461 = vmul.f32 %v459, %v456
        %v462 = vadd.f32 %v451, %v461
        %v463 = vsub.f32 %v197, 0.6
        %v464 = vmul.f32 %v463, %v463
        %v465 = vmul.f32 %v464, -112.5
        %v466 = vmul.f32 %v465, 1.442695
        %v467 = vpow.pop %v466
        %468 = vset.pattern.permute.xlu0 24
        %469 = vperm.xlu0 %468, %v198
        %v470 = vpop.permute.xlu0 %469
        %v472 = vmul.f32 %v470, %v467
        %v473 = vadd.f32 %v462, %v472
        %v474 = vsub.f32 %v197, 0.6666667
        %v475 = vmul.f32 %v474, %v474
        %v476 = vmul.f32 %v475, -112.5
        %v477 = vmul.f32 %v476, 1.442695
        %v478 = vpow.pop %v477
        %479 = vset.pattern.permute.xlu0 25
        %480 = vperm.xlu0 %479, %v198
        %v481 = vpop.permute.xlu0 %480
        %v483 = vmul.f32 %v481, %v478
        %v484 = vadd.f32 %v473, %v483
        %v485 = vsub.f32 %v197, 0.73333335
        %v486 = vmul.f32 %v485, %v485
        %v487 = vmul.f32 %v486, -112.5
        %v488 = vmul.f32 %v487, 1.442695
        %v489 = vpow.pop %v488
        %490 = vset.pattern.permute.xlu0 26
        %491 = vperm.xlu0 %490, %v198
        %v492 = vpop.permute.xlu0 %491
        %v494 = vmul.f32 %v492, %v489
        %v495 = vadd.f32 %v484, %v494
        %v496 = vsub.f32 %v197, 0.8
        %v497 = vmul.f32 %v496, %v496
        %v498 = vmul.f32 %v497, -112.5
        %v499 = vmul.f32 %v498, 1.442695
        %v500 = vpow.pop %v499
        %501 = vset.pattern.permute.xlu0 27
        %502 = vperm.xlu0 %501, %v198
        %v503 = vpop.permute.xlu0 %502
        %v505 = vmul.f32 %v503, %v500
        %v506 = vadd.f32 %v495, %v505
        %v507 = vsub.f32 %v197, 0.8666667
        %v508 = vmul.f32 %v507, %v507
        %v509 = vmul.f32 %v508, -112.5
        %v510 = vmul.f32 %v509, 1.442695
        %v511 = vpow.pop %v510
        %512 = vset.pattern.permute.xlu0 28
        %513 = vperm.xlu0 %512, %v198
        %v514 = vpop.permute.xlu0 %513
        %v516 = vmul.f32 %v514, %v511
        %v517 = vadd.f32 %v506, %v516
        %v518 = vsub.f32 %v197, 0.93333334
        %v519 = vmul.f32 %v518, %v518
        %v520 = vmul.f32 %v519, -112.5
        %v521 = vmul.f32 %v520, 1.442695
        %v522 = vpow.pop %v521
        %523 = vset.pattern.permute.xlu0 29
        %524 = vperm.xlu0 %523, %v198
        %v525 = vpop.permute.xlu0 %524
        %v527 = vmul.f32 %v525, %v522
        %v528 = vadd.f32 %v517, %v527
        %v529 = vsub.f32 %v197, 1.0
        %v530 = vmul.f32 %v529, %v529
        %v531 = vmul.f32 %v530, -112.5
        %v532 = vmul.f32 %v531, 1.442695
        %v533 = vpow.pop %v532
        %534 = vset.pattern.permute.xlu0 30
        %535 = vperm.xlu0 %534, %v198
        %v536 = vpop.permute.xlu0 %535
        %v538 = vmul.f32 %v536, %v533
        %v539 = vadd.f32 %v528, %v538
        %540 = vst [vmem:[%s196] sm:$0xff] %v539
        %s541 = sand.u32 %s96, 1
        %s542 = scalar_lea.sflag [#allocation4], %s541
        %s543 = sand.u32 %s96, 1
        %s544 = smul.addr %s543, 8
        %s545 = scalar_lea.vmem [#allocation7], %s544
        // Predicated region
        $region37: #{tpu_custom_call.1} parent=27 // pred_check
          %p546 = pneg %p106
        $region38: #{tpu_custom_call.1} parent=27 // pred_check_branch
          %548 = sbr.rel (%p546) target = $region40
        $region39: #{tpu_custom_call.1} parent=27 // pred_region
          %s550 = ssub.s32 128, 128
          %551 = vsyncadd %s542, %s550
          %s552 = smul.addr %s24, 2
          %s553 = sadd.s32 %s25, %s552
          %s554 = smul.addr %s553, 128
          %s555 = scalar_lea.hbm %s2, %s554
          %s557 = sshll.u32 %s545, 4
          %s558 = int_to_ptr.vmem [resolvable:$true] %s557
          %560 = dma.vmem_to_hbm [thread:$0]  %s558, 128, %s555, %s542
        $region40: #{tpu_custom_call.1} parent=27 // pred_fallthru
          _
      $region28: #{tpu_custom_call.1} parent=5 // pred_fallthru
        _
      %p561 = scmp.le.s32.totalorder 2, %s15
      // Predicated region
      $region41: #{tpu_custom_call.1} parent=5 // pred_check
        %p562 = pneg %p561
      $region42: #{tpu_custom_call.1} parent=5 // pred_check_branch
        %564 = sbr.rel (%p562) target = $region44
      $region43: #{tpu_custom_call.1} parent=5 // pred_region
        %s565 = ssub.s32 %s15, 2
        // Predicated region
        $region45: #{tpu_custom_call.1} parent=43 // pred_check
          %p566 = pneg %p112
        $region46: #{tpu_custom_call.1} parent=43 // pred_check_branch
          %568 = sbr.rel (%p566) target = $region48
        $region47: #{tpu_custom_call.1} parent=43 // pred_region
          %s569 = sand.u32 %s97, 1
          %s570 = scalar_lea.sflag [#allocation4], %s569
          %s571 = sand.u32 %s97, 1
          %s572 = smul.addr %s571, 8
          %s573 = scalar_lea.vmem [#allocation7], %s572
          %574 = dma.done %s570, 128
        $region48: #{tpu_custom_call.1} parent=43 // pred_fallthru
          _
      $region44: #{tpu_custom_call.1} parent=5 // pred_fallthru
        _
    $region6: #{tpu_custom_call.1} parent=1 // loop_footer
      %s19 = sadd.s32 1, %s15
    $region7: #{tpu_custom_call.1} parent=1 // loop_footer_branch
      %14 = sbr.rel target = $region3
    $region8: #{tpu_custom_call.1} parent=1 // loop_exit
      _
    %575 = vsyncpa [#allocation3], 1
    %s576 = scalar_lea.sflag [#allocation3], 1
    %577 = vsyncpa %s576, 1
    %578 = vsyncpa [#allocation6], 1
    %579 = vsyncpa [#allocation4], 1
    %s580 = scalar_lea.sflag [#allocation4], 1
    %581 = vsyncpa %s580, 1

</llo_original>
